<compile_context>
chip_gen: v6e
topology: v6e:2x2x1
jax: 0.10.0
libtpu: 0.0.40
codegen_flags: <defaults>
</compile_context>

<pallas_src>
import functools

import jax
import jax.numpy as jnp
from jax.experimental import pallas as pl
from jax.experimental.pallas import tpu as pltpu

K = 7            # conv kernel size
PAD = K // 2     # padding=3, same as nn.Conv2d(2, 1, 7, padding=3, bias=False)


# ----------------------------------------------------------------------------
# Stage 1: lane-dense channel max / mean reduction.
# ----------------------------------------------------------------------------
def _channel_reduce_kernel(x_ref, o_ref, *, c_total, tc, need_mask):
    # x_ref: VMEM (1, TC, HW)  lane-dense channel tile of one image
    # o_ref: VMEM (1, 2, HW)   resident across the C axis; row 0 = max,
    #                          row 1 = sum -> mean (f32)
    c_step = pl.program_id(1)

    x = x_ref[0].astype(jnp.float32)                          # (TC, HW)
    if need_mask:
        # Last tile may extend past C (cdiv grid); mask invalid channels.
        ch = jax.lax.broadcasted_iota(jnp.int32, x.shape, 0) + c_step * tc
        valid = ch < c_total
        x_max = jnp.where(valid, x, -jnp.inf)
        x_sum = jnp.where(valid, x, 0.0)
    else:
        x_max = x
        x_sum = x

    tile_max = jnp.max(x_max, axis=0)                         # (HW,)
    tile_sum = jnp.sum(x_sum, axis=0)                         # (HW,)

    @pl.when(c_step == 0)
    def _first():
        o_ref[0, 0] = tile_max
        o_ref[0, 1] = tile_sum

    @pl.when(c_step > 0)
    def _accumulate():
        o_ref[0, 0] = jnp.maximum(o_ref[0, 0], tile_max)
        o_ref[0, 1] = o_ref[0, 1] + tile_sum

    @pl.when(c_step == pl.num_programs(1) - 1)
    def _finalize():
        o_ref[0, 1] = o_ref[0, 1] * (1.0 / c_total)           # sum -> mean


# ----------------------------------------------------------------------------
# Stage 2: 7x7 conv (2 in channels -> 1 out, zero pad 3) + sigmoid.
# ----------------------------------------------------------------------------
def _conv_sigmoid_kernel(w_ref, m_ref, o_ref,
                         padm_ref, pada_ref, msh_ref, ash_ref):
    # w_ref   : SMEM f32[2*K*K]    flattened conv weight (out=1, in=2, 7, 7)
    # m_ref   : VMEM (1, 2, H, W)  [max, mean] maps of one image (f32)
    # o_ref   : VMEM (1, 1, H, W)  sigmoid(conv(...))
    # padm/pada: VMEM (Hp, Wp)     zero-padded maps
    # msh/ash : VMEM (K, Hp, W)    lane-shifted copies of the padded maps
    H, W = o_ref.shape[2], o_ref.shape[3]
    Hp = padm_ref.shape[0]

    # Zero halo + fill interior.  (Scratch is per-core under megacore
    # sharding, so zero every step rather than only on program_id == 0.)
    padm_ref[...] = jnp.zeros_like(padm_ref)
    pada_ref[...] = jnp.zeros_like(pada_ref)
    padm_ref[PAD:PAD + H, PAD:PAD + W] = m_ref[0, 0].astype(jnp.float32)
    pada_ref[PAD:PAD + H, PAD:PAD + W] = m_ref[0, 1].astype(jnp.float32)

    # Hoist the 7 lane (kj) shifts of each padded map (14 misaligned slices,
    # once per image).
    for kj in range(K):
        msh_ref[kj] = padm_ref[:, kj:kj + W]
        ash_ref[kj] = pada_ref[:, kj:kj + W]

    # 7x7 conv restructured as: per ki, a horizontal pass of 14 aligned
    # scalar*vector FMAs over (Hp, W), then ONE sublane-offset slice.
    # Total misaligned sublane slices: 7 (vs 98 if sliced per tap).
    acc = jnp.zeros((H, W), jnp.float32)
    for ki in range(K):
        hrow = jnp.zeros((Hp, W), jnp.float32)
        for kj in range(K):
            w_max = w_ref[ki * K + kj]                # scalars from SMEM
            w_avg = w_ref[K * K + ki * K + kj]
            hrow = hrow + w_max * msh_ref[kj] + w_avg * ash_ref[kj]
        acc = acc + hrow[ki:ki + H, :]

    o_ref[0, 0] = jax.nn.sigmoid(acc).astype(o_ref.dtype)


# ----------------------------------------------------------------------------
# Wrapper
# ----------------------------------------------------------------------------
def _pick_channel_tile(C, HW, itemsize, target_bytes):
    """Channel tile sized by bytes (block ~= target_bytes), multiple of 8."""
    cap = target_bytes // max(1, HW * itemsize)
    if cap >= C or C <= 8:
        return C
    cap = max(8, (int(cap) // 8) * 8)
    # Prefer a multiple-of-8 divisor of C that is not much smaller than cap
    # (no masked last tile); otherwise use cap and mask the last tile.
    for tc in range(cap, 7, -8):
        if C % tc == 0 and 2 * tc >= cap:
            return tc
    return cap


def spatial_attention(x, weight, *, target_block_bytes=2 << 20):
    """x: (N, C, H, W), weight: (1, 2, 7, 7) -> (N, 1, H, W), dtype of x.

    target_block_bytes sizes the stage-1 channel tile (raise ~2x on v7x's
    faster HBM; the default keeps double-buffered blocks well inside the
    v5e 16 MiB scoped-VMEM default).  Max/mean accumulate in f32 regardless
    of input dtype.
    """
    N, C, H, W = x.shape
    HW = H * W
    Hp, Wp = H + 2 * PAD, W + 2 * PAD

    TC = _pick_channel_tile(C, HW, x.dtype.itemsize, target_block_bytes)
    n_ct = pl.cdiv(C, TC)
    need_mask = (C % TC) != 0

    x_flat = x.reshape(N, C, HW)                       # free metadata reshape
    w_flat = weight.reshape(-1).astype(jnp.float32)    # (2*K*K,)

    reduce_kernel = functools.partial(
        _channel_reduce_kernel, c_total=C, tc=TC, need_mask=need_mask)

    # Stage 1: (N, C, HW) -> (N, 2, HW) lane-dense max/mean maps (f32).
    maps = pl.pallas_call(
        reduce_kernel,
        out_shape=jax.ShapeDtypeStruct((N, 2, HW), jnp.float32),
        grid=(N, n_ct),
        in_specs=[pl.BlockSpec((1, TC, HW), lambda n, c: (n, c, 0))],
        out_specs=pl.BlockSpec((1, 2, HW), lambda n, c: (n, 0, 0)),
        compiler_params=pltpu.CompilerParams(
            dimension_semantics=("parallel", "arbitrary")),
    )(x_flat)

    maps_nchw = maps.reshape(N, 2, H, W)               # free metadata reshape

    # Stage 2: 7x7 conv + sigmoid, once per image.
    out = pl.pallas_call(
        _conv_sigmoid_kernel,
        out_shape=jax.ShapeDtypeStruct((N, 1, H, W), x.dtype),
        grid=(N,),
        in_specs=[
            pl.BlockSpec(memory_space=pltpu.MemorySpace.SMEM),      # weights
            pl.BlockSpec((1, 2, H, W), lambda n: (n, 0, 0, 0)),     # maps
        ],
        out_specs=pl.BlockSpec((1, 1, H, W), lambda n: (n, 0, 0, 0)),
        scratch_shapes=[
            pltpu.VMEM((Hp, Wp), jnp.float32),      # padded max map
            pltpu.VMEM((Hp, Wp), jnp.float32),      # padded mean map
            pltpu.VMEM((K, Hp, W), jnp.float32),    # lane-shifted max copies
            pltpu.VMEM((K, Hp, W), jnp.float32),    # lane-shifted mean copies
        ],
        compiler_params=pltpu.CompilerParams(
            dimension_semantics=("parallel",)),
    )(w_flat, maps_nchw)
    return out


def spatial_attention_ref(x, weight):
    """Pure-JAX reference mirroring the PyTorch forward."""
    max_out = jnp.max(x, axis=1, keepdims=True)
    avg_out = jnp.mean(x, axis=1, keepdims=True)
    cat = jnp.concatenate([max_out, avg_out], axis=1)          # (N, 2, H, W)
    out = jax.lax.conv_general_dilated(
        cat, weight, window_strides=(1, 1),
        padding=((PAD, PAD), (PAD, PAD)),
        dimension_numbers=("NCHW", "OIHW", "NCHW"))
    return jax.nn.sigmoid(out)


if __name__ == "__main__":
    key = jax.random.PRNGKey(0)
    kw, k1, k2, k3 = jax.random.split(key, 4)

    # Deterministic synthetic conv weight, shape (out=1, in=2, 7, 7), no bias.
    weight = 0.1 * jax.random.normal(kw, (1, 2, K, K), dtype=jnp.float32)

    # 1) Canonical small case: single channel tile.
    x1 = jax.random.normal(k1, (2, 4, 16, 16), dtype=jnp.float32)
    out1 = jax.block_until_ready(spatial_attention(x1, weight))
    ref1 = spatial_attention_ref(x1, weight)
    assert out1.shape == (2, 1, 16, 16)
    assert jnp.allclose(out1, ref1, atol=1e-5, rtol=1e-5), \
        f"max abs err {jnp.max(jnp.abs(out1 - ref1))}"

    # 2) Multi-step channel accumulation with an exact divisor tile
    #    (C=32 -> TC=16) and non-multiple-of-8 spatial dims.
    x2 = jax.random.normal(k2, (1, 32, 20, 20), dtype=jnp.float32)
    out2 = jax.block_until_ready(
        spatial_attention(x2, weight, target_block_bytes=16 * 400 * 4))
    ref2 = spatial_attention_ref(x2, weight)
    assert jnp.allclose(out2, ref2, atol=1e-5, rtol=1e-5), \
        f"max abs err {jnp.max(jnp.abs(out2 - ref2))}"

    # 3) Masked last channel tile (C=12 with TC=8).
    x3 = jax.random.normal(k3, (1, 12, 20, 20), dtype=jnp.float32)
    out3 = jax.block_until_ready(
        spatial_attention(x3, weight, target_block_bytes=8 * 400 * 4))
    ref3 = spatial_attention_ref(x3, weight)
    assert jnp.allclose(out3, ref3, atol=1e-5, rtol=1e-5), \
        f"max abs err {jnp.max(jnp.abs(out3 - ref3))}"

    print("KERNEL_OK")
</pallas_src>

<mosaic_0001>
module attributes {stable_mosaic.version = 11 : i64} {
  func.func @_channel_reduce_kernel(%arg0: i32, %arg1: i32, %arg2: memref<1x4x256xf32, #tpu.memory_space<vmem>>, %arg3: memref<1x2x256xf32, #tpu.memory_space<vmem>>) attributes {dimension_semantics = [#tpu.dimension_semantics<parallel>, #tpu.dimension_semantics<arbitrary>], iteration_bounds = array<i64: 2, 1>, scalar_prefetch = 0 : i64, scratch_operands = 0 : i64, tpu.core_type = #tpu.core_type<tc>, window_params = [{transform_indices = @transform_0, window_bounds = array<i64: 1, 4, 256>}, {transform_indices = @transform_1, window_bounds = array<i64: 1, 2, 256>}]} {
    %c0 = arith.constant 0 : index
    %c0_0 = arith.constant 0 : index
    %c0_1 = arith.constant 0 : index
    %0 = vector.load %arg2[%c0, %c0_0, %c0_1] : memref<1x4x256xf32, #tpu.memory_space<vmem>>, vector<1x4x256xf32>
    %1 = vector.shape_cast %0 : vector<1x4x256xf32> to vector<4x256xf32>
    %cst = arith.constant dense<0xFF800000> : vector<256xf32>
    %2 = vector.multi_reduction <maximumf>, %1, %cst [0] : vector<4x256xf32> to vector<256xf32>
    %cst_2 = arith.constant dense<0.000000e+00> : vector<256xf32>
    %3 = vector.multi_reduction <add>, %1, %cst_2 [0] : vector<4x256xf32> to vector<256xf32>
    %c0_i32 = arith.constant 0 : i32
    %4 = arith.cmpi eq, %arg1, %c0_i32 : i32
    %5 = arith.extui %4 : i1 to i32
    %c0_i32_3 = arith.constant 0 : i32
    %6 = arith.cmpi ne, %5, %c0_i32_3 : i32
    scf.if %6 {
      %c0_8 = arith.constant 0 : index
      %c0_9 = arith.constant 0 : index
      %c0_10 = arith.constant 0 : index
      %13 = vector.load %arg3[%c0_8, %c0_9, %c0_10] : memref<1x2x256xf32, #tpu.memory_space<vmem>>, vector<1x1x256xf32>
      %14 = vector.shape_cast %13 : vector<1x1x256xf32> to vector<256xf32>
      %15 = vector.shape_cast %2 : vector<256xf32> to vector<1x1x256xf32>
      tpu.vector_store %arg3[%c0_8, %c0_9, %c0_10], %15 {strides = array<i32>} : memref<1x2x256xf32, #tpu.memory_space<vmem>>, vector<1x1x256xf32>,
      %c0_11 = arith.constant 0 : index
      %c1 = arith.constant 1 : index
      %c0_12 = arith.constant 0 : index
      %16 = vector.load %arg3[%c0_11, %c1, %c0_12] : memref<1x2x256xf32, #tpu.memory_space<vmem>>, vector<1x1x256xf32>
      %17 = vector.shape_cast %16 : vector<1x1x256xf32> to vector<256xf32>
      %18 = vector.shape_cast %3 : vector<256xf32> to vector<1x1x256xf32>
      tpu.vector_store %arg3[%c0_11, %c1, %c0_12], %18 {strides = array<i32>} : memref<1x2x256xf32, #tpu.memory_space<vmem>>, vector<1x1x256xf32>,
    } else {
    }
    %c0_i32_4 = arith.constant 0 : i32
    %7 = arith.cmpi sgt, %arg1, %c0_i32_4 : i32
    %8 = arith.extui %7 : i1 to i32
    %c0_i32_5 = arith.constant 0 : i32
    %9 = arith.cmpi ne, %8, %c0_i32_5 : i32
    scf.if %9 {
      %c0_8 = arith.constant 0 : index
      %c0_9 = arith.constant 0 : index
      %c0_10 = arith.constant 0 : index
      %13 = vector.load %arg3[%c0_8, %c0_9, %c0_10] : memref<1x2x256xf32, #tpu.memory_space<vmem>>, vector<1x1x256xf32>
      %14 = vector.shape_cast %13 : vector<1x1x256xf32> to vector<256xf32>
      %15 = arith.maximumf %14, %2 : vector<256xf32>
      %c0_11 = arith.constant 0 : index
      %c0_12 = arith.constant 0 : index
      %c0_13 = arith.constant 0 : index
      %16 = vector.load %arg3[%c0_11, %c0_12, %c0_13] : memref<1x2x256xf32, #tpu.memory_space<vmem>>, vector<1x1x256xf32>
      %17 = vector.shape_cast %16 : vector<1x1x256xf32> to vector<256xf32>
      %18 = vector.shape_cast %15 : vector<256xf32> to vector<1x1x256xf32>
      tpu.vector_store %arg3[%c0_11, %c0_12, %c0_13], %18 {strides = array<i32>} : memref<1x2x256xf32, #tpu.memory_space<vmem>>, vector<1x1x256xf32>,
      %c0_14 = arith.constant 0 : index
      %c1 = arith.constant 1 : index
      %c0_15 = arith.constant 0 : index
      %19 = vector.load %arg3[%c0_14, %c1, %c0_15] : memref<1x2x256xf32, #tpu.memory_space<vmem>>, vector<1x1x256xf32>
      %20 = vector.shape_cast %19 : vector<1x1x256xf32> to vector<256xf32>
      %21 = arith.addf %20, %3 : vector<256xf32>
      %c0_16 = arith.constant 0 : index
      %c1_17 = arith.constant 1 : index
      %c0_18 = arith.constant 0 : index
      %22 = vector.load %arg3[%c0_16, %c1_17, %c0_18] : memref<1x2x256xf32, #tpu.memory_space<vmem>>, vector<1x1x256xf32>
      %23 = vector.shape_cast %22 : vector<1x1x256xf32> to vector<256xf32>
      %24 = vector.shape_cast %21 : vector<256xf32> to vector<1x1x256xf32>
      tpu.vector_store %arg3[%c0_16, %c1_17, %c0_18], %24 {strides = array<i32>} : memref<1x2x256xf32, #tpu.memory_space<vmem>>, vector<1x1x256xf32>,
    } else {
    }
    %c0_i32_6 = arith.constant 0 : i32
    %10 = arith.cmpi eq, %arg1, %c0_i32_6 : i32
    %11 = arith.extui %10 : i1 to i32
    %c0_i32_7 = arith.constant 0 : i32
    %12 = arith.cmpi ne, %11, %c0_i32_7 : i32
    scf.if %12 {
      %c0_8 = arith.constant 0 : index
      %c1 = arith.constant 1 : index
      %c0_9 = arith.constant 0 : index
      %13 = vector.load %arg3[%c0_8, %c1, %c0_9] : memref<1x2x256xf32, #tpu.memory_space<vmem>>, vector<1x1x256xf32>
      %14 = vector.shape_cast %13 : vector<1x1x256xf32> to vector<256xf32>
      %cst_10 = arith.constant 2.500000e-01 : f32
      %15 = vector.broadcast %cst_10 : f32 to vector<256xf32>
      %16 = arith.mulf %14, %15 : vector<256xf32>
      %c0_11 = arith.constant 0 : index
      %c1_12 = arith.constant 1 : index
      %c0_13 = arith.constant 0 : index
      %17 = vector.load %arg3[%c0_11, %c1_12, %c0_13] : memref<1x2x256xf32, #tpu.memory_space<vmem>>, vector<1x1x256xf32>
      %18 = vector.shape_cast %17 : vector<1x1x256xf32> to vector<256xf32>
      %19 = vector.shape_cast %16 : vector<256xf32> to vector<1x1x256xf32>
      tpu.vector_store %arg3[%c0_11, %c1_12, %c0_13], %19 {strides = array<i32>} : memref<1x2x256xf32, #tpu.memory_space<vmem>>, vector<1x1x256xf32>,
    } else {
    }
    return
  }
  func.func @transform_0(%arg0: i32, %arg1: i32) -> (i32, i32, i32) {
    %c0_i32 = arith.constant 0 : i32
    %c0_i32_0 = arith.constant 0 : i32
    return %arg0, %arg1, %c0_i32 : i32, i32, i32
  }
  func.func @transform_1(%arg0: i32, %arg1: i32) -> (i32, i32, i32) {
    %c0_i32 = arith.constant 0 : i32
    %c0_i32_0 = arith.constant 0 : i32
    %c0_i32_1 = arith.constant 0 : i32
    return %arg0, %c0_i32, %c0_i32_0 : i32, i32, i32
  }
}

</mosaic_0001>

<llo_original>
// kernel: tpu_custom_call.1
$region0: #{tpu_custom_call.1}
  #allocation0 [shape = 'u32[]', space=smem, size = 0x4, offset = 0x4, fixed_abs, tag = 'smem constant byte address 0x4 - core index']
  #allocation1 [shape = 'u32[144,128]{1,0:T(1,128)}', space=vmem, size = 0x12000, scoped, tag = 'internal scratch']
  %s0 = inlined_call_operand.hbm [shape: f32[2,4,256], index: 0, kind: input, shape index: {}]
  %s1 = inlined_call_operand.hbm [shape: f32[2,2,256], index: 1, kind: output, shape index: {}]
  %s2 = sld [smem:[#allocation0]]
  $region53: #{tpu_custom_call.1} parent=0
    _
  %s4 = ssub.s32 1, %s2
  %s5 = scalar_select 0, %s4, %s2
  $region1: #{tpu_custom_call.1} parent=0
    #allocation2 [shape = 'u8[8192]{0}', space=vmem, size = 0x2000, scoped, tag = 'input window, operand 0']
    #allocation3 [shape = 's32[2]{0}', space=sflag, size = 0x8, scoped, tag = 'scoped memory for tpu_custom_call.1']
    #allocation4 [shape = 's32[2]{0}', space=sflag, size = 0x8, scoped, tag = 'scoped memory for tpu_custom_call.1']
    #allocation5 [shape = 'u8[4096]{0}', space=vmem, size = 0x1000, scoped, tag = 'output window, operand 0']
    %6 = vsyncpa [#allocation3], 0
    %s7 = scalar_lea.sflag [#allocation3], 1
    %8 = vsyncpa %s7, 0
    %9 = vsyncpa [#allocation4], 0
    %s10 = scalar_lea.sflag [#allocation4], 1
    %11 = vsyncpa %s10, 0
    loop: start=0, step=1, limit=4
    $region2: #{tpu_custom_call.1} parent=1 // loop_pre_header
      _
    $region3: #{tpu_custom_call.1} parent=1 // loop_header
      %s13 = sphi 0, %s17
      %p14 = scmp.ge.s32.totalorder %s13, 4
      %s20 = sphi 0, %s32
      %s21 = sphi 0, %s28
      %s22 = sphi 0, %s20
      %s23 = sphi 0, %s21
      %s24 = sphi 0, %s22
      %s25 = sphi 0, %s23
      %s37 = sphi 0, %s39
      %s40 = sphi 0, %s37
      %s41 = sphi 0, %s40
      %s57 = sphi 0, %s41
      %s63 = sphi 0, %s65
      %s66 = sphi 0, %s63
      %s67 = sphi 0, %s66
      %s83 = sphi 0, %s67
    $region4: #{tpu_custom_call.1} parent=1 // loop_header_branch
      %16 = sbr.rel (%p14) target = $region8
    $region5: #{tpu_custom_call.1} parent=1 // loop_body
      %s18 = ssub.s32 %s13, 1
      %s19 = ssub.s32 %s13, 2
      %s26 = sadd.s32 1, %s21
      %p27 = scmp.ge.s32.totalorder %s26, 1
      %s28 = scalar_select %p27, 0, %s26
      %s29 = sadd.s32 1, %s20
      %s30 = scalar_select %p27, %s29, %s20
      %p31 = scmp.ge.s32.totalorder %s30, 2
      %s32 = scalar_select %p31, 0, %s30
      %s33 = ssub.s32 %s20, %s32
      %s34 = ssub.s32 %s21, %s28
      %s35 = sor.u32 %s33, %s34
      %p36 = scmp.eq.s32.totalorder %s35, 0
      %s38 = sadd.s32 %s37, 1
      %s39 = scalar_select %p36, %s37, %s38
      %p42 = pneg %p36
      %p43 = scmp.eq.s32.totalorder %s13, 1
      %p44 = por %p42, %p43
      %p45 = scmp.ne.s32.totalorder %s37, %s40
      %p46 = scmp.eq.s32.totalorder %s13, 0
      %p47 = por %p45, %p46
      %p48 = scmp.ne.s32.totalorder %s37, %s40
      %p49 = scmp.eq.s32.totalorder %s18, 1
      %p50 = por %p48, %p49
      %p51 = scmp.ne.s32.totalorder %s40, %s41
      %p52 = scmp.eq.s32.totalorder %s18, 0
      %p53 = por %p51, %p52
      %p54 = scmp.ne.s32.totalorder %s40, %s41
      %p55 = scmp.eq.s32.totalorder %s19, 1
      %p56 = por %p54, %p55
      %p58 = scmp.ne.s32.totalorder %s41, %s57
      %p59 = scmp.eq.s32.totalorder %s19, 0
      %p60 = por %p58, %p59
      %s61 = ssub.s32 %s20, %s32
      %p62 = scmp.eq.s32.totalorder %s61, 0
      %s64 = sadd.s32 %s63, 1
      %s65 = scalar_select %p62, %s63, %s64
      %p68 = pneg %p62
      %p69 = scmp.eq.s32.totalorder %s13, 1
      %p70 = por %p68, %p69
      %p71 = scmp.ne.s32.totalorder %s63, %s66
      %p72 = scmp.eq.s32.totalorder %s13, 0
      %p73 = por %p71, %p72
      %p74 = scmp.ne.s32.totalorder %s63, %s66
      %p75 = scmp.eq.s32.totalorder %s18, 1
      %p76 = por %p74, %p75
      %p77 = scmp.ne.s32.totalorder %s66, %s67
      %p78 = scmp.eq.s32.totalorder %s18, 0
      %p79 = por %p77, %p78
      %p80 = scmp.ne.s32.totalorder %s66, %s67
      %p81 = scmp.eq.s32.totalorder %s19, 1
      %p82 = por %p80, %p81
      %p84 = scmp.ne.s32.totalorder %s67, %s83
      %p85 = scmp.eq.s32.totalorder %s19, 0
      %p86 = por %p84, %p85
      %p87 = scmp.le.s32.totalorder 1, %s13
      %p88 = scmp.lt.s32.totalorder %s13, 3
      %p89 = pnand %p87, %p88
      %p90 = pneg %p89
      // Predicated region
      $region9: #{tpu_custom_call.1} parent=5 // pred_check
        _
      $region10: #{tpu_custom_call.1} parent=5 // pred_check_branch
        %92 = sbr.rel (%p89) target = $region12
      $region11: #{tpu_custom_call.1} parent=5 // pred_region
        %s93 = ssub.s32 %s13, 1
      $region12: #{tpu_custom_call.1} parent=5 // pred_fallthru
        _
      %p94 = scmp.lt.s32.totalorder %s13, 2
      // Predicated region
      $region13: #{tpu_custom_call.1} parent=5 // pred_check
        %p95 = pneg %p94
      $region14: #{tpu_custom_call.1} parent=5 // pred_check_branch
        %97 = sbr.rel (%p95) target = $region16
      $region15: #{tpu_custom_call.1} parent=5 // pred_region
        // Predicated region
        $region17: #{tpu_custom_call.1} parent=15 // pred_check
          %p98 = pneg %p47
        $region18: #{tpu_custom_call.1} parent=15 // pred_check_branch
          %100 = sbr.rel (%p98) target = $region20
        $region19: #{tpu_custom_call.1} parent=15 // pred_region
          %s101 = sand.u32 %s37, 1
          %s102 = scalar_lea.sflag [#allocation3], %s101
          %s103 = sand.u32 %s37, 1
          %s104 = smul.addr %s103, 8
          %s105 = scalar_lea.vmem [#allocation2], %s104
          %s107 = ssub.s32 128, 128
          %108 = vsyncadd %s102, %s107
          %s109 = smul.addr %s21, 2
          %s110 = smul.addr %s20, 2
          %s111 = sadd.s32 %s109, %s110
          %s112 = smul.addr %s111, 64
          %s113 = scalar_lea.hbm %s0, %s112
          %s115 = sshll.u32 %s105, 4
          %s116 = int_to_ptr.vmem [resolvable:$true] %s115
          %118 = dma.hbm_to_vmem [thread:$0]  %s113, 128, %s116, %s102
        $region20: #{tpu_custom_call.1} parent=15 // pred_fallthru
          _
      $region16: #{tpu_custom_call.1} parent=5 // pred_fallthru
        _
      %p119 = scmp.le.s32.totalorder 1, %s13
      %p120 = scmp.lt.s32.totalorder %s13, 3
      %p121 = pnand %p119, %p120
      %p122 = pneg %p121
      // Predicated region
      $region21: #{tpu_custom_call.1} parent=5 // pred_check
        _
      $region22: #{tpu_custom_call.1} parent=5 // pred_check_branch
        %124 = sbr.rel (%p121) target = $region24
      $region23: #{tpu_custom_call.1} parent=5 // pred_region
        %s125 = ssub.s32 %s13, 1
        %s126 = sand.u32 %s40, 1
        %s127 = scalar_lea.sflag [#allocation3], %s126
        %s128 = sand.u32 %s40, 1
        %s129 = smul.addr %s128, 8
        %s130 = scalar_lea.vmem [#allocation2], %s129
        // Predicated region
        $region25: #{tpu_custom_call.1} parent=23 // pred_check
          %p131 = pneg %p53
        $region26: #{tpu_custom_call.1} parent=23 // pred_check_branch
          %133 = sbr.rel (%p131) target = $region28
        $region27: #{tpu_custom_call.1} parent=23 // pred_region
          %134 = dma.done %s127, 128
        $region28: #{tpu_custom_call.1} parent=23 // pred_fallthru
          _
        %s135 = sand.u32 %s40, 1
        %s136 = scalar_lea.sflag [#allocation3], %s135
        %s137 = sand.u32 %s40, 1
        %s138 = smul.addr %s137, 8
        %s139 = scalar_lea.vmem [#allocation2], %s138
        %p140 = pneg %p53
        %p141 = pneg %p50
        %p142 = pneg %p79
        %p143 = pneg %p76
        %s144 = sand.u32 %s66, 1
        %s145 = scalar_lea.sflag [#allocation4], %s144
        %s146 = sand.u32 %s66, 1
        %s147 = smul.addr %s146, 4
        %s148 = scalar_lea.vmem [#allocation5], %s147
        %v149 = vld [vmem:[%s130] sm:$0xff]
        %v151 = vcombine.high %v149, %v149
        %vm153 = vcmask 1043456
        %v154 = vsel %vm153, %v149, -inf
        %v155 = vrot.slane %v154, 4
        %v156 = vmax.f32 %v154, %v155
        %v157 = vrot.slane %v156, 2
        %v158 = vmax.f32 %v156, %v157
        %v159 = vrot.slane %v158, 1
        %v160 = vmax.f32 %v158, %v159
        %v161 = vsel %vm153, %v151, -inf
        %v162 = vrot.slane %v161, 4
        %v163 = vmax.f32 %v161, %v162
        %v164 = vrot.slane %v163, 2
        %v165 = vmax.f32 %v163, %v164
        %v166 = vrot.slane %v165, 1
        %v167 = vmax.f32 %v165, %v166
        %v168 = vsel %vm153, %v149, 0.0
        %v169 = vrot.slane %v168, 4
        %v170 = vadd.f32 %v168, %v169
        %v171 = vrot.slane %v170, 2
        %v172 = vadd.f32 %v170, %v171
        %v173 = vrot.slane %v172, 1
        %v174 = vadd.f32 %v172, %v173
        %v175 = vsel %vm153, %v151, 0.0
        %v176 = vrot.slane %v175, 4
        %v177 = vadd.f32 %v175, %v176
        %v178 = vrot.slane %v177, 2
        %v179 = vadd.f32 %v177, %v178
        %v180 = vrot.slane %v179, 1
        %v181 = vadd.f32 %v179, %v180
        %p182 = scmp.eq.s32.totalorder %s23, 0
        // Predicated region
        $region29: #{tpu_custom_call.1} parent=23 // pred_check
          %p183 = pneg %p182
        $region30: #{tpu_custom_call.1} parent=23 // pred_check_branch
          %185 = sbr.rel (%p183) target = $region32
        $region31: #{tpu_custom_call.1} parent=23 // pred_region
          %v188 = vcombine.low %v160, %v167
          %v190 = vunpack.c.l.s4 1966171168
          %v191 = vunpack.c.0.s8 %v190
          %v192 = vlaneseq
          %v193 = vshrl.u32 %v192, 7
          %v194 = vsub.s32 %v191, %v193
          %v195 = vrot.slane %v188, %v194
          %v197 = vunpack.c.l.s4 1966171168
          %v198 = vunpack.c.0.s8 %v197
          %v199 = vlaneseq
          %v200 = vshrl.u32 %v199, 7
          %v201 = vsub.s32 %v198, %v200
          %v202 = vrot.slane %v195, %v201
          %v204 = vlaneseq
          %vm205 = vcmp.ge.s32.totalorder %v204, 0
          %vm206 = vcmp.lt.s32.totalorder %v204, 256
          %vm207 = vmand %vm205, %vm206
          %208 = vst.msk [vmem:[%s148] ss:$2 sm:$0x3] %vm207, %v202
          %v211 = vcombine.low %v174, %v181
          %v213 = vunpack.c.l.s4 1966171168
          %v214 = vunpack.c.0.s8 %v213
          %v215 = vlaneseq
          %v216 = vshrl.u32 %v215, 7
          %v217 = vsub.s32 %v214, %v216
          %v218 = vrot.slane %v211, %v217
          %v220 = vunpack.c.l.s4 1966171168
          %v221 = vunpack.c.0.s8 %v220
          %v222 = vlaneseq
          %v223 = vshrl.u32 %v222, 7
          %v224 = vsub.s32 %v221, %v223
          %v225 = vrot.slane %v218, %v224
          %s227 = scalar_lea.vmem %s148, 1 [#allocation5]
          %228 = vst.msk [vmem:[%s227] ss:$2 sm:$0x3] %vm207, %v225
        $region32: #{tpu_custom_call.1} parent=23 // pred_fallthru
          _
        %p229 = scmp.gt.s32.totalorder %s23, 0
        // Predicated region
        $region33: #{tpu_custom_call.1} parent=23 // pred_check
          %p230 = pneg %p229
        $region34: #{tpu_custom_call.1} parent=23 // pred_check_branch
          %232 = sbr.rel (%p230) target = $region36
        $region35: #{tpu_custom_call.1} parent=23 // pred_region
          %v233 = vld [vmem:[%s148] ss:$2 sm:$0x3]
          %v236 = vcombine.low %v160, %v167
          %v238 = vunpack.c.l.s4 1966171168
          %v239 = vunpack.c.0.s8 %v238
          %v240 = vlaneseq
          %v241 = vshrl.u32 %v240, 7
          %v242 = vsub.s32 %v239, %v241
          %v243 = vrot.slane %v236, %v242
          %v245 = vunpack.c.l.s4 1966171168
          %v246 = vunpack.c.0.s8 %v245
          %v247 = vlaneseq
          %v248 = vshrl.u32 %v247, 7
          %v249 = vsub.s32 %v246, %v248
          %v250 = vrot.slane %v243, %v249
          %v252 = vmax.f32 %v233, %v250
          %v253 = vlaneseq
          %vm254 = vcmp.ge.s32.totalorder %v253, 0
          %vm255 = vcmp.lt.s32.totalorder %v253, 256
          %vm256 = vmand %vm254, %vm255
          %257 = vst.msk [vmem:[%s148] ss:$2 sm:$0x3] %vm256, %v252
          %s258 = scalar_lea.vmem %s148, 1 [#allocation5]
          %v259 = vld [vmem:[%s258] ss:$2 sm:$0x3]
          %v262 = vcombine.low %v174, %v181
          %v264 = vunpack.c.l.s4 1966171168
          %v265 = vunpack.c.0.s8 %v264
          %v266 = vlaneseq
          %v267 = vshrl.u32 %v266, 7
          %v268 = vsub.s32 %v265, %v267
          %v269 = vrot.slane %v262, %v268
          %v271 = vunpack.c.l.s4 1966171168
          %v272 = vunpack.c.0.s8 %v271
          %v273 = vlaneseq
          %v274 = vshrl.u32 %v273, 7
          %v275 = vsub.s32 %v272, %v274
          %v276 = vrot.slane %v269, %v275
          %v278 = vadd.f32 %v259, %v276
          %279 = vst.msk [vmem:[%s258] ss:$2 sm:$0x3] %vm256, %v278
        $region36: #{tpu_custom_call.1} parent=23 // pred_fallthru
          _
        // Predicated region
        $region37: #{tpu_custom_call.1} parent=23 // pred_check
          %p280 = pneg %p182
        $region38: #{tpu_custom_call.1} parent=23 // pred_check_branch
          %282 = sbr.rel (%p280) target = $region40
        $region39: #{tpu_custom_call.1} parent=23 // pred_region
          %s283 = scalar_lea.vmem %s148, 1 [#allocation5]
          %v284 = vld [vmem:[%s283] ss:$2 sm:$0x3]
          %v285 = vmul.f32 %v284, 0.25
          %v286 = vlaneseq
          %vm287 = vcmp.ge.s32.totalorder %v286, 0
          %vm288 = vcmp.lt.s32.totalorder %v286, 256
          %vm289 = vmand %vm287, %vm288
          %290 = vst.msk [vmem:[%s283] ss:$2 sm:$0x3] %vm289, %v285
        $region40: #{tpu_custom_call.1} parent=23 // pred_fallthru
          _
        %s291 = sand.u32 %s66, 1
        %s292 = scalar_lea.sflag [#allocation4], %s291
        %s293 = sand.u32 %s66, 1
        %s294 = smul.addr %s293, 4
        %s295 = scalar_lea.vmem [#allocation5], %s294
        // Predicated region
        $region41: #{tpu_custom_call.1} parent=23 // pred_check
          %p296 = pneg %p76
        $region42: #{tpu_custom_call.1} parent=23 // pred_check_branch
          %298 = sbr.rel (%p296) target = $region44
        $region43: #{tpu_custom_call.1} parent=23 // pred_region
          %s300 = ssub.s32 64, 64
          %301 = vsyncadd %s292, %s300
          %s302 = smul.addr %s22, 2
          %s303 = smul.addr %s302, 32
          %s304 = scalar_lea.hbm %s1, %s303
          %s306 = sshll.u32 %s295, 4
          %s307 = int_to_ptr.vmem [resolvable:$true] %s306
          %309 = dma.vmem_to_hbm [thread:$0]  %s307, 64, %s304, %s292
        $region44: #{tpu_custom_call.1} parent=23 // pred_fallthru
          _
      $region24: #{tpu_custom_call.1} parent=5 // pred_fallthru
        _
      %p310 = scmp.le.s32.totalorder 2, %s13
      // Predicated region
      $region45: #{tpu_custom_call.1} parent=5 // pred_check
        %p311 = pneg %p310
      $region46: #{tpu_custom_call.1} parent=5 // pred_check_branch
        %313 = sbr.rel (%p311) target = $region48
      $region47: #{tpu_custom_call.1} parent=5 // pred_region
        %s314 = ssub.s32 %s13, 2
        // Predicated region
        $region49: #{tpu_custom_call.1} parent=47 // pred_check
          %p315 = pneg %p82
        $region50: #{tpu_custom_call.1} parent=47 // pred_check_branch
          %317 = sbr.rel (%p315) target = $region52
        $region51: #{tpu_custom_call.1} parent=47 // pred_region
          %s318 = sand.u32 %s67, 1
          %s319 = scalar_lea.sflag [#allocation4], %s318
          %s320 = sand.u32 %s67, 1
          %s321 = smul.addr %s320, 4
          %s322 = scalar_lea.vmem [#allocation5], %s321
          %323 = dma.done %s319, 64
        $region52: #{tpu_custom_call.1} parent=47 // pred_fallthru
          _
      $region48: #{tpu_custom_call.1} parent=5 // pred_fallthru
        _
    $region6: #{tpu_custom_call.1} parent=1 // loop_footer
      %s17 = sadd.s32 1, %s13
    $region7: #{tpu_custom_call.1} parent=1 // loop_footer_branch
      %12 = sbr.rel target = $region3
    $region8: #{tpu_custom_call.1} parent=1 // loop_exit
      _
    %324 = vsyncpa [#allocation3], 1
    %s325 = scalar_lea.sflag [#allocation3], 1
    %326 = vsyncpa %s325, 1
    %327 = vsyncpa [#allocation4], 1
    %s328 = scalar_lea.sflag [#allocation4], 1
    %329 = vsyncpa %s328, 1

</llo_original>
